<compile_context>
chip_gen: v5e
topology: v5e:2x2
jax: 0.10.0
libtpu: 0.0.40
codegen_flags: <defaults>
</compile_context>

<pallas_src>
import functools

import jax
import jax.numpy as jnp
from jax import lax
from jax.experimental import pallas as pl
from jax.experimental.pallas import tpu as pltpu


def _cdiv(a, b):
    return -(-a // b)


def _round_up(a, b):
    return _cdiv(a, b) * b


def _transe_tile_kernel(h_ref, r_ref, t_ref, nh_ref, out_ref, *,
                        gamma, valid_batch, tile_b):
    """One batch tile.

    Input refs hold contiguous (tile_b, E) blocks straight from the gather output.
    They are transposed in-kernel to (E, tile_b) so the batch sits on the lane axis
    (full lane utilization; per-sample reductions become cheap sublane sums).
    out_ref is a lane-dense (1, tile_b) block holding relu(gamma + d1 - d2) with the
    padded lanes already masked to zero.
    """
    eps_norm = 1e-12   # F.normalize default eps  (clamp n2 at eps^2 for rsqrt)
    eps_dist = 1e-6    # F.pairwise_distance default eps (added to the difference)

    def load_t(ref):
        # (TB, E) -> (E, TB); the XLU transpose overlaps with the (HBM-bound) DMA.
        return jnp.transpose(ref[...].astype(jnp.float32))

    def l2_normalize(x):
        n2 = jnp.sum(x * x, axis=0, keepdims=True)                    # (1, TB)
        # 1/max(sqrt(n2), eps) == rsqrt(max(n2, eps^2)) for eps > 0 -> one EUP op.
        return x * lax.rsqrt(jnp.maximum(n2, eps_norm * eps_norm))

    # Ordering keeps few (E, TB) operands live at once (vreg/VMEM pressure):
    # r, t die after `base`; h dies after d1; nh dies after d2.
    rn = l2_normalize(load_t(r_ref))
    tn = l2_normalize(load_t(t_ref))
    base = rn - tn + eps_dist                                         # shared term

    diff1 = l2_normalize(load_t(h_ref)) + base
    d1 = jnp.sqrt(jnp.sum(diff1 * diff1, axis=0, keepdims=True))      # (1, TB)

    diff2 = l2_normalize(load_t(nh_ref)) + base
    d2 = jnp.sqrt(jnp.sum(diff2 * diff2, axis=0, keepdims=True))      # (1, TB)

    hinge = jnp.maximum(gamma + d1 - d2, 0.0)                         # (1, TB)

    # Mask padded lanes in-kernel so the wrapper can safely sum the whole output.
    lane = lax.broadcasted_iota(jnp.int32, hinge.shape, 1)
    global_idx = pl.program_id(0) * tile_b + lane
    out_ref[...] = jnp.where(global_idx < valid_batch, hinge, 0.0)


def transe_loss_pallas(h_emb, r_emb, t_emb, nh_emb, gamma, *,
                       valid_batch=None, tile_b=8192):
    """h_emb, r_emb, t_emb, nh_emb: (B, E) raw (un-normalized) gathered embeddings.

    Rows >= valid_batch (if given) are padding and do not contribute to the loss.
    """
    B, E = h_emb.shape
    if valid_batch is None:
        valid_batch = B

    # Effective tile: multiple of 128 lanes, no larger than the padded batch.
    tile_b = max(128, min(int(tile_b), _round_up(B, 128)))
    tile_b -= tile_b % 128
    num_tiles = _cdiv(B, tile_b)
    b_pad = num_tiles * tile_b

    if b_pad != B:
        # Fallback path only: forward() already pads the index arrays so this is a
        # no-op there.  Padded rows are masked in-kernel anyway.
        pad = b_pad - B
        h_emb, r_emb, t_emb, nh_emb = (
            jnp.pad(x, ((0, pad), (0, 0))) for x in (h_emb, r_emb, t_emb, nh_emb))

    # Double-buffered input blocks: 4 inputs x 2 bufs x tile_b x E x 4 B.
    dbuf_bytes = 4 * 2 * tile_b * E * 4
    vmem_limit = int(min(48 << 20, max(32 << 20, 6 * dbuf_bytes)))

    kernel = functools.partial(
        _transe_tile_kernel,
        gamma=float(gamma), valid_batch=int(valid_batch), tile_b=int(tile_b))

    per_sample = pl.pallas_call(
        kernel,
        out_shape=jax.ShapeDtypeStruct((1, b_pad), jnp.float32),
        grid=(num_tiles,),
        # Contiguous (tile_b, E) blocks (last dim E equals the full array dim, so the
        # (8,128) rule is satisfied).  If a bundle dump ever shows exposed DMA at
        # large tile_b, add pipeline_mode=pl.Buffered(3) here.
        in_specs=[pl.BlockSpec((tile_b, E), lambda i: (i, 0))] * 4,
        out_specs=pl.BlockSpec((1, tile_b), lambda i: (0, i)),
        compiler_params=pltpu.CompilerParams(
            dimension_semantics=("parallel",),
            vmem_limit_bytes=vmem_limit),
    )(h_emb, r_emb, t_emb, nh_emb)

    # Padded lanes are already zeroed in-kernel; a full sum is safe and cheap in XLA.
    return jnp.sum(per_sample)


class TransEPallas:
    """JAX/Pallas port of the TransE module's forward pass (loss computation)."""

    def __init__(self, entity_size, relation_size, embedding_size, gamma, key):
        k1, k2 = jax.random.split(key)
        # PyTorch .normal_(0.1) => mean=0.1, std=1.0
        self.entity_weight = (
            jax.random.normal(k1, (entity_size, embedding_size), jnp.float32) + 0.1)
        self.relation_weight = (
            jax.random.normal(k2, (relation_size, embedding_size), jnp.float32) + 0.1)
        self.entity_size = entity_size
        self.relation_size = relation_size
        self.embedding_size = embedding_size
        self.gamma = gamma

    def negative_sampling(self, key, shape):
        kh, kt = jax.random.split(key)
        neg_head = jax.random.randint(kh, shape, 0, self.entity_size, jnp.int32)
        neg_tail = jax.random.randint(kt, shape, 0, self.entity_size, jnp.int32)
        return neg_head, neg_tail

    def forward(self, head, rel, tail, sample_key, *, tile_b=8192):
        B = head.shape[0]
        neg_head, _neg_tail = self.negative_sampling(sample_key, head.shape)
        # (negative-tail embedding is fetched by the torch code but unused in calc_loss)

        # Pick the tile first so we can pad the *index* arrays (4 x b_pad x 4 B)
        # instead of the gathered embeddings (4 full (b_pad, E) HBM copies).
        eff_tile = max(128, min(int(tile_b), _round_up(B, 128)))
        eff_tile -= eff_tile % 128
        b_pad = _round_up(B, eff_tile)

        def pad_idx(idx):
            return jnp.pad(idx, (0, b_pad - B)) if b_pad != B else idx

        head_p, rel_p, tail_p, nh_p = map(pad_idx, (head, rel, tail, neg_head))

        # Embedding-row gather stays as XLA glue for now (see TODO at top).
        h_emb = jnp.take(self.entity_weight, head_p, axis=0)
        r_emb = jnp.take(self.relation_weight, rel_p, axis=0)
        t_emb = jnp.take(self.entity_weight, tail_p, axis=0)
        nh_emb = jnp.take(self.entity_weight, nh_p, axis=0)

        return transe_loss_pallas(h_emb, r_emb, t_emb, nh_emb, self.gamma,
                                  valid_batch=B, tile_b=eff_tile)


def _reference_loss(h_emb, r_emb, t_emb, nh_emb, gamma):
    def norm(x):
        n = jnp.sqrt(jnp.sum(x * x, axis=1, keepdims=True))
        return x / jnp.maximum(n, 1e-12)

    h, r, t, nh = norm(h_emb), norm(r_emb), norm(t_emb), norm(nh_emb)
    d1 = jnp.sqrt(jnp.sum((h + r - t + 1e-6) ** 2, axis=1))
    d2 = jnp.sqrt(jnp.sum((nh + r - t + 1e-6) ** 2, axis=1))
    return jnp.sum(jnp.maximum(gamma + d1 - d2, 0.0))


if __name__ == "__main__":
    key = jax.random.PRNGKey(0)
    k_model, k_head, k_rel, k_tail, k_neg = jax.random.split(key, 5)

    entity_size = 1000
    relation_size = 50
    embedding_size = 32
    batch = 200        # not a multiple of the tile -> exercises the padding/mask path
    gamma = 1.0
    tile_b = 128       # small tile for the demo (2 grid steps); default is 8192 at scale

    model = TransEPallas(entity_size, relation_size, embedding_size, gamma, k_model)

    head = jax.random.randint(k_head, (batch,), 0, entity_size, jnp.int32)
    rel = jax.random.randint(k_rel, (batch,), 0, relation_size, jnp.int32)
    tail = jax.random.randint(k_tail, (batch,), 0, entity_size, jnp.int32)

    loss = model.forward(head, rel, tail, k_neg, tile_b=tile_b)
    loss = jax.block_until_ready(loss)

    # Silent correctness check against a pure-JAX reference.
    neg_head, _ = model.negative_sampling(k_neg, head.shape)
    ref = _reference_loss(
        jnp.take(model.entity_weight, head, axis=0),
        jnp.take(model.relation_weight, rel, axis=0),
        jnp.take(model.entity_weight, tail, axis=0),
        jnp.take(model.entity_weight, neg_head, axis=0),
        gamma)
    assert jnp.allclose(loss, ref, rtol=2e-4, atol=1e-3), (loss, ref)

    print("KERNEL_OK")
</pallas_src>

<mosaic_0001>
module attributes {stable_mosaic.version = 11 : i64} {
  func.func @_transe_tile_kernel(%arg0: i32, %arg1: memref<128x32xf32, #tpu.memory_space<vmem>>, %arg2: memref<128x32xf32, #tpu.memory_space<vmem>>, %arg3: memref<128x32xf32, #tpu.memory_space<vmem>>, %arg4: memref<128x32xf32, #tpu.memory_space<vmem>>, %arg5: memref<1x128xf32, #tpu.memory_space<vmem>>) attributes {dimension_semantics = [#tpu.dimension_semantics<parallel>], iteration_bounds = array<i64: 2>, scalar_prefetch = 0 : i64, scratch_operands = 0 : i64, tpu.core_type = #tpu.core_type<tc>, window_params = [{transform_indices = @transform_0, window_bounds = array<i64: 128, 32>}, {transform_indices = @transform_1, window_bounds = array<i64: 128, 32>}, {transform_indices = @transform_2, window_bounds = array<i64: 128, 32>}, {transform_indices = @transform_3, window_bounds = array<i64: 128, 32>}, {transform_indices = @transform_4, window_bounds = array<i64: 1, 128>}]} {
    %c0 = arith.constant 0 : index
    %c0_0 = arith.constant 0 : index
    %0 = vector.load %arg2[%c0, %c0_0] : memref<128x32xf32, #tpu.memory_space<vmem>>, vector<128x32xf32>
    %1 = tpu.transpose %0, [1, 0] : vector<128x32xf32> -> vector<32x128xf32>
    %2 = arith.mulf %1, %1 : vector<32x128xf32>
    %cst = arith.constant dense<0.000000e+00> : vector<128xf32>
    %3 = vector.multi_reduction <add>, %2, %cst [0] : vector<32x128xf32> to vector<128xf32>
    %4 = vector.shape_cast %3 : vector<128xf32> to vector<1x128xf32>
    %cst_1 = arith.constant 1.000000e-24 : f32
    %5 = vector.broadcast %cst_1 : f32 to vector<1x128xf32>
    %6 = arith.maximumf %4, %5 : vector<1x128xf32>
    %7 = math.rsqrt %6 : vector<1x128xf32>
    %8 = vector.broadcast %7 : vector<1x128xf32> to vector<32x128xf32>
    %9 = arith.mulf %1, %8 : vector<32x128xf32>
    %c0_2 = arith.constant 0 : index
    %c0_3 = arith.constant 0 : index
    %10 = vector.load %arg3[%c0_2, %c0_3] : memref<128x32xf32, #tpu.memory_space<vmem>>, vector<128x32xf32>
    %11 = tpu.transpose %10, [1, 0] : vector<128x32xf32> -> vector<32x128xf32>
    %12 = arith.mulf %11, %11 : vector<32x128xf32>
    %cst_4 = arith.constant dense<0.000000e+00> : vector<128xf32>
    %13 = vector.multi_reduction <add>, %12, %cst_4 [0] : vector<32x128xf32> to vector<128xf32>
    %14 = vector.shape_cast %13 : vector<128xf32> to vector<1x128xf32>
    %cst_5 = arith.constant 1.000000e-24 : f32
    %15 = vector.broadcast %cst_5 : f32 to vector<1x128xf32>
    %16 = arith.maximumf %14, %15 : vector<1x128xf32>
    %17 = math.rsqrt %16 : vector<1x128xf32>
    %18 = vector.broadcast %17 : vector<1x128xf32> to vector<32x128xf32>
    %19 = arith.mulf %11, %18 : vector<32x128xf32>
    %20 = arith.subf %9, %19 : vector<32x128xf32>
    %cst_6 = arith.constant 9.99999997E-7 : f32
    %21 = vector.broadcast %cst_6 : f32 to vector<32x128xf32>
    %22 = arith.addf %20, %21 : vector<32x128xf32>
    %c0_7 = arith.constant 0 : index
    %c0_8 = arith.constant 0 : index
    %23 = vector.load %arg1[%c0_7, %c0_8] : memref<128x32xf32, #tpu.memory_space<vmem>>, vector<128x32xf32>
    %24 = tpu.transpose %23, [1, 0] : vector<128x32xf32> -> vector<32x128xf32>
    %25 = arith.mulf %24, %24 : vector<32x128xf32>
    %cst_9 = arith.constant dense<0.000000e+00> : vector<128xf32>
    %26 = vector.multi_reduction <add>, %25, %cst_9 [0] : vector<32x128xf32> to vector<128xf32>
    %27 = vector.shape_cast %26 : vector<128xf32> to vector<1x128xf32>
    %cst_10 = arith.constant 1.000000e-24 : f32
    %28 = vector.broadcast %cst_10 : f32 to vector<1x128xf32>
    %29 = arith.maximumf %27, %28 : vector<1x128xf32>
    %30 = math.rsqrt %29 : vector<1x128xf32>
    %31 = vector.broadcast %30 : vector<1x128xf32> to vector<32x128xf32>
    %32 = arith.mulf %24, %31 : vector<32x128xf32>
    %33 = arith.addf %32, %22 : vector<32x128xf32>
    %34 = arith.mulf %33, %33 : vector<32x128xf32>
    %cst_11 = arith.constant dense<0.000000e+00> : vector<128xf32>
    %35 = vector.multi_reduction <add>, %34, %cst_11 [0] : vector<32x128xf32> to vector<128xf32>
    %36 = vector.shape_cast %35 : vector<128xf32> to vector<1x128xf32>
    %37 = math.sqrt %36 : vector<1x128xf32>
    %c0_12 = arith.constant 0 : index
    %c0_13 = arith.constant 0 : index
    %38 = vector.load %arg4[%c0_12, %c0_13] : memref<128x32xf32, #tpu.memory_space<vmem>>, vector<128x32xf32>
    %39 = tpu.transpose %38, [1, 0] : vector<128x32xf32> -> vector<32x128xf32>
    %40 = arith.mulf %39, %39 : vector<32x128xf32>
    %cst_14 = arith.constant dense<0.000000e+00> : vector<128xf32>
    %41 = vector.multi_reduction <add>, %40, %cst_14 [0] : vector<32x128xf32> to vector<128xf32>
    %42 = vector.shape_cast %41 : vector<128xf32> to vector<1x128xf32>
    %cst_15 = arith.constant 1.000000e-24 : f32
    %43 = vector.broadcast %cst_15 : f32 to vector<1x128xf32>
    %44 = arith.maximumf %42, %43 : vector<1x128xf32>
    %45 = math.rsqrt %44 : vector<1x128xf32>
    %46 = vector.broadcast %45 : vector<1x128xf32> to vector<32x128xf32>
    %47 = arith.mulf %39, %46 : vector<32x128xf32>
    %48 = arith.addf %47, %22 : vector<32x128xf32>
    %49 = arith.mulf %48, %48 : vector<32x128xf32>
    %cst_16 = arith.constant dense<0.000000e+00> : vector<128xf32>
    %50 = vector.multi_reduction <add>, %49, %cst_16 [0] : vector<32x128xf32> to vector<128xf32>
    %51 = vector.shape_cast %50 : vector<128xf32> to vector<1x128xf32>
    %52 = math.sqrt %51 : vector<1x128xf32>
    %cst_17 = arith.constant 1.000000e+00 : f32
    %53 = vector.broadcast %cst_17 : f32 to vector<1x128xf32>
    %54 = arith.addf %53, %37 : vector<1x128xf32>
    %55 = arith.subf %54, %52 : vector<1x128xf32>
    %cst_18 = arith.constant 0.000000e+00 : f32
    %56 = vector.broadcast %cst_18 : f32 to vector<1x128xf32>
    %57 = arith.maximumf %55, %56 : vector<1x128xf32>
    %58 = tpu.iota {dimensions = array<i32: 1>} : vector<1x128xi32>
    %c128_i32 = arith.constant 128 : i32
    %59 = arith.muli %arg0, %c128_i32 : i32
    %60 = vector.broadcast %59 : i32 to vector<1x128xi32>
    %61 = arith.addi %60, %58 : vector<1x128xi32>
    %c200_i32 = arith.constant 200 : i32
    %62 = vector.broadcast %c200_i32 : i32 to vector<1x128xi32>
    %63 = arith.cmpi slt, %61, %62 : vector<1x128xi32>
    %cst_19 = arith.constant 0.000000e+00 : f32
    %64 = vector.broadcast %cst_19 : f32 to vector<1x128xf32>
    %65 = arith.select %63, %57, %64 : vector<1x128xi1>, vector<1x128xf32>
    %c0_20 = arith.constant 0 : index
    %c0_21 = arith.constant 0 : index
    %66 = vector.load %arg5[%c0_20, %c0_21] : memref<1x128xf32, #tpu.memory_space<vmem>>, vector<1x128xf32>
    tpu.vector_store %arg5[%c0_20, %c0_21], %65 {strides = array<i32>} : memref<1x128xf32, #tpu.memory_space<vmem>>, vector<1x128xf32>,
    return
  }
  func.func @transform_0(%arg0: i32) -> (i32, i32) {
    %c0_i32 = arith.constant 0 : i32
    %c0_i32_0 = arith.constant 0 : i32
    return %arg0, %c0_i32 : i32, i32
  }
  func.func @transform_1(%arg0: i32) -> (i32, i32) {
    %c0_i32 = arith.constant 0 : i32
    %c0_i32_0 = arith.constant 0 : i32
    return %arg0, %c0_i32 : i32, i32
  }
  func.func @transform_2(%arg0: i32) -> (i32, i32) {
    %c0_i32 = arith.constant 0 : i32
    %c0_i32_0 = arith.constant 0 : i32
    return %arg0, %c0_i32 : i32, i32
  }
  func.func @transform_3(%arg0: i32) -> (i32, i32) {
    %c0_i32 = arith.constant 0 : i32
    %c0_i32_0 = arith.constant 0 : i32
    return %arg0, %c0_i32 : i32, i32
  }
  func.func @transform_4(%arg0: i32) -> (i32, i32) {
    %c0_i32 = arith.constant 0 : i32
    %c0_i32_0 = arith.constant 0 : i32
    return %c0_i32, %arg0 : i32, i32
  }
}

</mosaic_0001>

<llo_original>
// kernel: tpu_custom_call.1
$region0: #{tpu_custom_call.1}
  #allocation0 [shape = 'u32[]', space=smem, size = 0x4, offset = 0x4, fixed_abs, tag = 'smem constant byte address 0x4 - core index']
  #allocation1 [shape = 'u32[72,128]{1,0:T(1,128)}', space=vmem, size = 0x9000, scoped, tag = 'internal scratch']
  %s0 = inlined_call_operand.vmem [shape: f32[256,32], index: 0, kind: input, shape index: {}]
  %s1 = inlined_call_operand.vmem [shape: f32[256,32], index: 1, kind: input, shape index: {}]
  %s2 = inlined_call_operand.vmem [shape: f32[256,32], index: 2, kind: input, shape index: {}]
  %s3 = inlined_call_operand.vmem [shape: f32[256,32], index: 3, kind: input, shape index: {}]
  %s4 = inlined_call_operand.hbm [shape: f32[1,256], index: 4, kind: output, shape index: {}]
  %s5 = sld [smem:[#allocation0]]
  $region49: #{tpu_custom_call.1} parent=0
    _
  %s7 = ssub.s32 1, %s5
  %s8 = scalar_select 0, %s7, %s5
  $region1: #{tpu_custom_call.1} parent=0
    #allocation2 [shape = 'u8[1024]{0}', space=vmem, size = 0x400, scoped, tag = 'output window, operand 0']
    #allocation3 [shape = 's32[2]{0}', space=sflag, size = 0x8, scoped, tag = 'scoped memory for tpu_custom_call.1']
    %9 = vsyncpa [#allocation3], 0
    %s10 = scalar_lea.sflag [#allocation3], 1
    %11 = vsyncpa %s10, 0
    loop: start=0, step=1, limit=4
    $region2: #{tpu_custom_call.1} parent=1 // loop_pre_header
      _
    $region3: #{tpu_custom_call.1} parent=1 // loop_header
      %s13 = sphi 0, %s17
      %p14 = scmp.ge.s32.totalorder %s13, 4
      %s23 = sphi 0, %s25
      %s26 = sphi 0, %s23
      %s27 = sphi 0, %s26
      %s43 = sphi 0, %s27
      %s49 = sphi 0, %s51
      %s52 = sphi 0, %s49
      %s53 = sphi 0, %s52
      %s69 = sphi 0, %s53
      %s75 = sphi 0, %s77
      %s78 = sphi 0, %s75
      %s79 = sphi 0, %s78
      %s95 = sphi 0, %s79
      %s101 = sphi 0, %s103
      %s104 = sphi 0, %s101
      %s105 = sphi 0, %s104
      %s121 = sphi 0, %s105
      %s127 = sphi 0, %s129
      %s130 = sphi 0, %s127
      %s131 = sphi 0, %s130
      %s147 = sphi 0, %s131
    $region4: #{tpu_custom_call.1} parent=1 // loop_header_branch
      %16 = sbr.rel (%p14) target = $region8
    $region5: #{tpu_custom_call.1} parent=1 // loop_body
      %s18 = ssub.s32 %s13, 1
      %s19 = ssub.s32 %s13, 2
      %s20 = sadd.s32 %s13, 1
      %s21 = ssub.s32 %s13, %s20
      %p22 = scmp.eq.s32.totalorder %s21, 0
      %s24 = sadd.s32 %s23, 1
      %s25 = scalar_select %p22, %s23, %s24
      %p28 = pneg %p22
      %p29 = scmp.eq.s32.totalorder %s13, 1
      %p30 = por %p28, %p29
      %p31 = scmp.ne.s32.totalorder %s23, %s26
      %p32 = scmp.eq.s32.totalorder %s13, 0
      %p33 = por %p31, %p32
      %p34 = scmp.ne.s32.totalorder %s23, %s26
      %p35 = scmp.eq.s32.totalorder %s18, 1
      %p36 = por %p34, %p35
      %p37 = scmp.ne.s32.totalorder %s26, %s27
      %p38 = scmp.eq.s32.totalorder %s18, 0
      %p39 = por %p37, %p38
      %p40 = scmp.ne.s32.totalorder %s26, %s27
      %p41 = scmp.eq.s32.totalorder %s19, 1
      %p42 = por %p40, %p41
      %p44 = scmp.ne.s32.totalorder %s27, %s43
      %p45 = scmp.eq.s32.totalorder %s19, 0
      %p46 = por %p44, %p45
      %s47 = ssub.s32 %s13, %s20
      %p48 = scmp.eq.s32.totalorder %s47, 0
      %s50 = sadd.s32 %s49, 1
      %s51 = scalar_select %p48, %s49, %s50
      %p54 = pneg %p48
      %p55 = scmp.eq.s32.totalorder %s13, 1
      %p56 = por %p54, %p55
      %p57 = scmp.ne.s32.totalorder %s49, %s52
      %p58 = scmp.eq.s32.totalorder %s13, 0
      %p59 = por %p57, %p58
      %p60 = scmp.ne.s32.totalorder %s49, %s52
      %p61 = scmp.eq.s32.totalorder %s18, 1
      %p62 = por %p60, %p61
      %p63 = scmp.ne.s32.totalorder %s52, %s53
      %p64 = scmp.eq.s32.totalorder %s18, 0
      %p65 = por %p63, %p64
      %p66 = scmp.ne.s32.totalorder %s52, %s53
      %p67 = scmp.eq.s32.totalorder %s19, 1
      %p68 = por %p66, %p67
      %p70 = scmp.ne.s32.totalorder %s53, %s69
      %p71 = scmp.eq.s32.totalorder %s19, 0
      %p72 = por %p70, %p71
      %s73 = ssub.s32 %s13, %s20
      %p74 = scmp.eq.s32.totalorder %s73, 0
      %s76 = sadd.s32 %s75, 1
      %s77 = scalar_select %p74, %s75, %s76
      %p80 = pneg %p74
      %p81 = scmp.eq.s32.totalorder %s13, 1
      %p82 = por %p80, %p81
      %p83 = scmp.ne.s32.totalorder %s75, %s78
      %p84 = scmp.eq.s32.totalorder %s13, 0
      %p85 = por %p83, %p84
      %p86 = scmp.ne.s32.totalorder %s75, %s78
      %p87 = scmp.eq.s32.totalorder %s18, 1
      %p88 = por %p86, %p87
      %p89 = scmp.ne.s32.totalorder %s78, %s79
      %p90 = scmp.eq.s32.totalorder %s18, 0
      %p91 = por %p89, %p90
      %p92 = scmp.ne.s32.totalorder %s78, %s79
      %p93 = scmp.eq.s32.totalorder %s19, 1
      %p94 = por %p92, %p93
      %p96 = scmp.ne.s32.totalorder %s79, %s95
      %p97 = scmp.eq.s32.totalorder %s19, 0
      %p98 = por %p96, %p97
      %s99 = ssub.s32 %s13, %s20
      %p100 = scmp.eq.s32.totalorder %s99, 0
      %s102 = sadd.s32 %s101, 1
      %s103 = scalar_select %p100, %s101, %s102
      %p106 = pneg %p100
      %p107 = scmp.eq.s32.totalorder %s13, 1
      %p108 = por %p106, %p107
      %p109 = scmp.ne.s32.totalorder %s101, %s104
      %p110 = scmp.eq.s32.totalorder %s13, 0
      %p111 = por %p109, %p110
      %p112 = scmp.ne.s32.totalorder %s101, %s104
      %p113 = scmp.eq.s32.totalorder %s18, 1
      %p114 = por %p112, %p113
      %p115 = scmp.ne.s32.totalorder %s104, %s105
      %p116 = scmp.eq.s32.totalorder %s18, 0
      %p117 = por %p115, %p116
      %p118 = scmp.ne.s32.totalorder %s104, %s105
      %p119 = scmp.eq.s32.totalorder %s19, 1
      %p120 = por %p118, %p119
      %p122 = scmp.ne.s32.totalorder %s105, %s121
      %p123 = scmp.eq.s32.totalorder %s19, 0
      %p124 = por %p122, %p123
      %s125 = ssub.s32 %s13, %s20
      %p126 = scmp.eq.s32.totalorder %s125, 0
      %s128 = sadd.s32 %s127, 1
      %s129 = scalar_select %p126, %s127, %s128
      %p132 = pneg %p126
      %p133 = scmp.eq.s32.totalorder %s13, 1
      %p134 = por %p132, %p133
      %p135 = scmp.ne.s32.totalorder %s127, %s130
      %p136 = scmp.eq.s32.totalorder %s13, 0
      %p137 = por %p135, %p136
      %p138 = scmp.ne.s32.totalorder %s127, %s130
      %p139 = scmp.eq.s32.totalorder %s18, 1
      %p140 = por %p138, %p139
      %p141 = scmp.ne.s32.totalorder %s130, %s131
      %p142 = scmp.eq.s32.totalorder %s18, 0
      %p143 = por %p141, %p142
      %p144 = scmp.ne.s32.totalorder %s130, %s131
      %p145 = scmp.eq.s32.totalorder %s19, 1
      %p146 = por %p144, %p145
      %p148 = scmp.ne.s32.totalorder %s131, %s147
      %p149 = scmp.eq.s32.totalorder %s19, 0
      %p150 = por %p148, %p149
      %p151 = scmp.le.s32.totalorder 1, %s13
      %p152 = scmp.lt.s32.totalorder %s13, 3
      %p153 = pnand %p151, %p152
      %p154 = pneg %p153
      // Predicated region
      $region9: #{tpu_custom_call.1} parent=5 // pred_check
        _
      $region10: #{tpu_custom_call.1} parent=5 // pred_check_branch
        %156 = sbr.rel (%p153) target = $region12
      $region11: #{tpu_custom_call.1} parent=5 // pred_region
        %s157 = ssub.s32 %s13, 1
      $region12: #{tpu_custom_call.1} parent=5 // pred_fallthru
        _
      %p158 = scmp.lt.s32.totalorder %s13, 2
      // Predicated region
      $region13: #{tpu_custom_call.1} parent=5 // pred_check
        %p159 = pneg %p158
      $region14: #{tpu_custom_call.1} parent=5 // pred_check_branch
        %161 = sbr.rel (%p159) target = $region16
      $region15: #{tpu_custom_call.1} parent=5 // pred_region
        // Predicated region
        $region17: #{tpu_custom_call.1} parent=15 // pred_check
          %p162 = pneg %p33
        $region18: #{tpu_custom_call.1} parent=15 // pred_check_branch
          %164 = sbr.rel (%p162) target = $region20
        $region19: #{tpu_custom_call.1} parent=15 // pred_region
          %s165 = smul.u32 16, %s13
          %p166 = scmp.lt.s32.totalorder %s165, 31
          %s167 = scalar_select %p166, %s165, 31
          %s168 = smul.addr %s167, 8
          %s169 = scalar_lea.vmem %s0, %s168
          %s170 = smul.u32 16, %s13
        $region20: #{tpu_custom_call.1} parent=15 // pred_fallthru
          _
        // Predicated region
        $region21: #{tpu_custom_call.1} parent=15 // pred_check
          %p171 = pneg %p59
        $region22: #{tpu_custom_call.1} parent=15 // pred_check_branch
          %173 = sbr.rel (%p171) target = $region24
        $region23: #{tpu_custom_call.1} parent=15 // pred_region
          %s174 = smul.u32 16, %s13
          %p175 = scmp.lt.s32.totalorder %s174, 31
          %s176 = scalar_select %p175, %s174, 31
          %s177 = smul.addr %s176, 8
          %s178 = scalar_lea.vmem %s1, %s177
          %s179 = smul.u32 16, %s13
        $region24: #{tpu_custom_call.1} parent=15 // pred_fallthru
          _
        // Predicated region
        $region25: #{tpu_custom_call.1} parent=15 // pred_check
          %p180 = pneg %p85
        $region26: #{tpu_custom_call.1} parent=15 // pred_check_branch
          %182 = sbr.rel (%p180) target = $region28
        $region27: #{tpu_custom_call.1} parent=15 // pred_region
          %s183 = smul.u32 16, %s13
          %p184 = scmp.lt.s32.totalorder %s183, 31
          %s185 = scalar_select %p184, %s183, 31
          %s186 = smul.addr %s185, 8
          %s187 = scalar_lea.vmem %s2, %s186
          %s188 = smul.u32 16, %s13
        $region28: #{tpu_custom_call.1} parent=15 // pred_fallthru
          _
        // Predicated region
        $region29: #{tpu_custom_call.1} parent=15 // pred_check
          %p189 = pneg %p111
        $region30: #{tpu_custom_call.1} parent=15 // pred_check_branch
          %191 = sbr.rel (%p189) target = $region32
        $region31: #{tpu_custom_call.1} parent=15 // pred_region
          %s192 = smul.u32 16, %s13
          %p193 = scmp.lt.s32.totalorder %s192, 31
          %s194 = scalar_select %p193, %s192, 31
          %s195 = smul.addr %s194, 8
          %s196 = scalar_lea.vmem %s3, %s195
          %s197 = smul.u32 16, %s13
        $region32: #{tpu_custom_call.1} parent=15 // pred_fallthru
          _
      $region16: #{tpu_custom_call.1} parent=5 // pred_fallthru
        _
      %p198 = scmp.le.s32.totalorder 1, %s13
      %p199 = scmp.lt.s32.totalorder %s13, 3
      %p200 = pnand %p198, %p199
      %p201 = pneg %p200
      // Predicated region
      $region33: #{tpu_custom_call.1} parent=5 // pred_check
        _
      $region34: #{tpu_custom_call.1} parent=5 // pred_check_branch
        %203 = sbr.rel (%p200) target = $region36
      $region35: #{tpu_custom_call.1} parent=5 // pred_region
        %s204 = ssub.s32 %s13, 1
        %s205 = smul.u32 16, %s18
        %p206 = scmp.lt.s32.totalorder %s205, 31
        %s207 = scalar_select %p206, %s205, 31
        %s208 = smul.addr %s207, 8
        %s209 = scalar_lea.vmem %s0, %s208
        %p210 = pneg %p39
        %p211 = pneg %p36
        %s212 = smul.u32 16, %s18
        %p213 = scmp.lt.s32.totalorder %s212, 31
        %s214 = scalar_select %p213, %s212, 31
        %s215 = smul.addr %s214, 8
        %s216 = scalar_lea.vmem %s1, %s215
        %p217 = pneg %p65
        %p218 = pneg %p62
        %s219 = smul.u32 16, %s18
        %p220 = scmp.lt.s32.totalorder %s219, 31
        %s221 = scalar_select %p220, %s219, 31
        %s222 = smul.addr %s221, 8
        %s223 = scalar_lea.vmem %s2, %s222
        %p224 = pneg %p91
        %p225 = pneg %p88
        %s226 = smul.u32 16, %s18
        %p227 = scmp.lt.s32.totalorder %s226, 31
        %s228 = scalar_select %p227, %s226, 31
        %s229 = smul.addr %s228, 8
        %s230 = scalar_lea.vmem %s3, %s229
        %p231 = pneg %p117
        %p232 = pneg %p114
        %p233 = pneg %p143
        %p234 = pneg %p140
        %s235 = sand.u32 %s130, 1
        %s236 = scalar_lea.sflag [#allocation3], %s235
        %s237 = sand.u32 %s130, 1
        %s238 = scalar_lea.vmem [#allocation2], %s237
        %s239 = smul.u32 16, %s18
        %p240 = scmp.lt.s32.totalorder %s239, 31
        %s241 = scalar_select %p240, %s239, 31
        %s242 = smul.addr %s241, 8
        %s243 = scalar_lea.vmem %s0, %s242
        %s244 = smul.u32 16, %s18
        %s245 = smul.u32 16, %s18
        %p246 = scmp.lt.s32.totalorder %s245, 31
        %s247 = scalar_select %p246, %s245, 31
        %s248 = smul.addr %s247, 8
        %s249 = scalar_lea.vmem %s1, %s248
        %s250 = smul.u32 16, %s18
        %s251 = smul.u32 16, %s18
        %p252 = scmp.lt.s32.totalorder %s251, 31
        %s253 = scalar_select %p252, %s251, 31
        %s254 = smul.addr %s253, 8
        %s255 = scalar_lea.vmem %s2, %s254
        %s256 = smul.u32 16, %s18
        %s257 = smul.u32 16, %s18
        %p258 = scmp.lt.s32.totalorder %s257, 31
        %s259 = scalar_select %p258, %s257, 31
        %s260 = smul.addr %s259, 8
        %s261 = scalar_lea.vmem %s3, %s260
        %s262 = smul.u32 16, %s18
        %v263 = vld [vmem:[%s249] sm:$0xff]
        %v264 = vld [vmem:[%s249 + $0x8] sm:$0xff]
        %v265 = vld [vmem:[%s249 + $0x10] sm:$0xff]
        %v266 = vld [vmem:[%s249 + $0x18] sm:$0xff]
        %v267 = vld [vmem:[%s249 + $0x20] sm:$0xff]
        %v268 = vld [vmem:[%s249 + $0x28] sm:$0xff]
        %v269 = vld [vmem:[%s249 + $0x30] sm:$0xff]
        %v270 = vld [vmem:[%s249 + $0x38] sm:$0xff]
        %v271 = vld [vmem:[%s249 + $0x40] sm:$0xff]
        %v272 = vld [vmem:[%s249 + $0x48] sm:$0xff]
        %v273 = vld [vmem:[%s249 + $0x50] sm:$0xff]
        %v274 = vld [vmem:[%s249 + $0x58] sm:$0xff]
        %v275 = vld [vmem:[%s249 + $0x60] sm:$0xff]
        %v276 = vld [vmem:[%s249 + $0x68] sm:$0xff]
        %v277 = vld [vmem:[%s249 + $0x70] sm:$0xff]
        %v278 = vld [vmem:[%s249 + $0x78] sm:$0xff]
        %279 = vxpose.xlu0.b32.start [1/16] %v263, 128
        %280 = vxpose.xlu0.b32.cont [2/16] %v264, 128
        %281 = vxpose.xlu0.b32.cont [3/16] %v265, 128
        %282 = vxpose.xlu0.b32.cont [4/16] %v266, 128
        %283 = vxpose.xlu0.b32.cont [5/16] %v267, 128
        %284 = vxpose.xlu0.b32.cont [6/16] %v268, 128
        %285 = vxpose.xlu0.b32.cont [7/16] %v269, 128
        %286 = vxpose.xlu0.b32.cont [8/16] %v270, 128
        %287 = vxpose.xlu0.b32.cont [9/16] %v271, 128
        %288 = vxpose.xlu0.b32.cont [10/16] %v272, 128
        %289 = vxpose.xlu0.b32.cont [11/16] %v273, 128
        %290 = vxpose.xlu0.b32.cont [12/16] %v274, 128
        %291 = vxpose.xlu0.b32.cont [13/16] %v275, 128
        %292 = vxpose.xlu0.b32.cont [14/16] %v276, 128
        %293 = vxpose.xlu0.b32.cont [15/16] %v277, 128
        %294 = vxpose.xlu0.b32.end [16/16] %v278, 128
        %v295 = vpop.trf.xlu0
        %v296 = vpop.trf.xlu0
        %v297 = vpop.trf.xlu0
        %v298 = vpop.trf.xlu0
        %v299 = vpop.trf.xlu0
        %v300 = vpop.trf.xlu0
        %v301 = vpop.trf.xlu0
        %v302 = vpop.trf.xlu0
        %v303 = vpop.trf.xlu0
        %v304 = vpop.trf.xlu0
        %v305 = vpop.trf.xlu0
        %v306 = vpop.trf.xlu0
        %v307 = vpop.trf.xlu0
        %v308 = vpop.trf.xlu0
        %v309 = vpop.trf.xlu0
        %v310 = vpop.trf.xlu0
        %v311 = vmul.f32 %v295, %v295
        %v312 = vmul.f32 %v296, %v296
        %v313 = vmul.f32 %v297, %v297
        %v314 = vmul.f32 %v298, %v298
        %v315 = vadd.f32 %v311, %v312
        %v316 = vadd.f32 %v315, %v313
        %v317 = vadd.f32 %v316, %v314
        %v318 = vrot.slane %v317, 4
        %v319 = vadd.f32 %v317, %v318
        %v320 = vrot.slane %v319, 2
        %v321 = vadd.f32 %v319, %v320
        %v322 = vrot.slane %v321, 1
        %v323 = vadd.f32 %v321, %v322
        %v324 = vmax.f32 %v323, 1e-24
        %v325 = vrsqrt.pop %v324
        %v326 = vmul.f32 %v325, %v324
        %v327 = vmul.f32 %v326, %v325
        %v328 = vmul.f32 0.5, %v327
        %v329 = vsub.f32 1.5, %v328
        %v330 = vmul.f32 %v325, %v329
        %vm331 = vweird.f32 %v324
        %vm332 = vweird.f32 %v325
        %vm333 = vmor %vm331, %vm332
        %v334 = vsel %vm333, %v325, %v330
        %v335 = vmul.f32 %v295, %v334
        %v336 = vmul.f32 %v296, %v334
        %v337 = vmul.f32 %v297, %v334
        %v338 = vmul.f32 %v298, %v334
        %v339 = vld [vmem:[%s255] sm:$0xff]
        %v340 = vld [vmem:[%s255 + $0x8] sm:$0xff]
        %v341 = vld [vmem:[%s255 + $0x10] sm:$0xff]
        %v342 = vld [vmem:[%s255 + $0x18] sm:$0xff]
        %v343 = vld [vmem:[%s255 + $0x20] sm:$0xff]
        %v344 = vld [vmem:[%s255 + $0x28] sm:$0xff]
        %v345 = vld [vmem:[%s255 + $0x30] sm:$0xff]
        %v346 = vld [vmem:[%s255 + $0x38] sm:$0xff]
        %v347 = vld [vmem:[%s255 + $0x40] sm:$0xff]
        %v348 = vld [vmem:[%s255 + $0x48] sm:$0xff]
        %v349 = vld [vmem:[%s255 + $0x50] sm:$0xff]
        %v350 = vld [vmem:[%s255 + $0x58] sm:$0xff]
        %v351 = vld [vmem:[%s255 + $0x60] sm:$0xff]
        %v352 = vld [vmem:[%s255 + $0x68] sm:$0xff]
        %v353 = vld [vmem:[%s255 + $0x70] sm:$0xff]
        %v354 = vld [vmem:[%s255 + $0x78] sm:$0xff]
        %355 = vxpose.xlu0.b32.start [1/16] %v339, 128
        %356 = vxpose.xlu0.b32.cont [2/16] %v340, 128
        %357 = vxpose.xlu0.b32.cont [3/16] %v341, 128
        %358 = vxpose.xlu0.b32.cont [4/16] %v342, 128
        %359 = vxpose.xlu0.b32.cont [5/16] %v343, 128
        %360 = vxpose.xlu0.b32.cont [6/16] %v344, 128
        %361 = vxpose.xlu0.b32.cont [7/16] %v345, 128
        %362 = vxpose.xlu0.b32.cont [8/16] %v346, 128
        %363 = vxpose.xlu0.b32.cont [9/16] %v347, 128
        %364 = vxpose.xlu0.b32.cont [10/16] %v348, 128
        %365 = vxpose.xlu0.b32.cont [11/16] %v349, 128
        %366 = vxpose.xlu0.b32.cont [12/16] %v350, 128
        %367 = vxpose.xlu0.b32.cont [13/16] %v351, 128
        %368 = vxpose.xlu0.b32.cont [14/16] %v352, 128
        %369 = vxpose.xlu0.b32.cont [15/16] %v353, 128
        %370 = vxpose.xlu0.b32.end [16/16] %v354, 128
        %v371 = vpop.trf.xlu0
        %v372 = vpop.trf.xlu0
        %v373 = vpop.trf.xlu0
        %v374 = vpop.trf.xlu0
        %v375 = vpop.trf.xlu0
        %v376 = vpop.trf.xlu0
        %v377 = vpop.trf.xlu0
        %v378 = vpop.trf.xlu0
        %v379 = vpop.trf.xlu0
        %v380 = vpop.trf.xlu0
        %v381 = vpop.trf.xlu0
        %v382 = vpop.trf.xlu0
        %v383 = vpop.trf.xlu0
        %v384 = vpop.trf.xlu0
        %v385 = vpop.trf.xlu0
        %v386 = vpop.trf.xlu0
        %v387 = vmul.f32 %v371, %v371
        %v388 = vmul.f32 %v372, %v372
        %v389 = vmul.f32 %v373, %v373
        %v390 = vmul.f32 %v374, %v374
        %v391 = vadd.f32 %v387, %v388
        %v392 = vadd.f32 %v391, %v389
        %v393 = vadd.f32 %v392, %v390
        %v394 = vrot.slane %v393, 4
        %v395 = vadd.f32 %v393, %v394
        %v396 = vrot.slane %v395, 2
        %v397 = vadd.f32 %v395, %v396
        %v398 = vrot.slane %v397, 1
        %v399 = vadd.f32 %v397, %v398
        %v400 = vmax.f32 %v399, 1e-24
        %v401 = vrsqrt.pop %v400
        %v402 = vmul.f32 %v401, %v400
        %v403 = vmul.f32 %v402, %v401
        %v404 = vmul.f32 0.5, %v403
        %v405 = vsub.f32 1.5, %v404
        %v406 = vmul.f32 %v401, %v405
        %vm407 = vweird.f32 %v400
        %vm408 = vweird.f32 %v401
        %vm409 = vmor %vm407, %vm408
        %v410 = vsel %vm409, %v401, %v406
        %v411 = vmul.f32 %v371, %v410
        %v412 = vmul.f32 %v372, %v410
        %v413 = vmul.f32 %v373, %v410
        %v414 = vmul.f32 %v374, %v410
        %v415 = vsub.f32 %v335, %v411
        %v416 = vsub.f32 %v336, %v412
        %v417 = vsub.f32 %v337, %v413
        %v418 = vsub.f32 %v338, %v414
        %v419 = vadd.f32 %v415, 1e-06
        %v420 = vadd.f32 %v416, 1e-06
        %v421 = vadd.f32 %v417, 1e-06
        %v422 = vadd.f32 %v418, 1e-06
        %v423 = vld [vmem:[%s243] sm:$0xff]
        %v424 = vld [vmem:[%s243 + $0x8] sm:$0xff]
        %v425 = vld [vmem:[%s243 + $0x10] sm:$0xff]
        %v426 = vld [vmem:[%s243 + $0x18] sm:$0xff]
        %v427 = vld [vmem:[%s243 + $0x20] sm:$0xff]
        %v428 = vld [vmem:[%s243 + $0x28] sm:$0xff]
        %v429 = vld [vmem:[%s243 + $0x30] sm:$0xff]
        %v430 = vld [vmem:[%s243 + $0x38] sm:$0xff]
        %v431 = vld [vmem:[%s243 + $0x40] sm:$0xff]
        %v432 = vld [vmem:[%s243 + $0x48] sm:$0xff]
        %v433 = vld [vmem:[%s243 + $0x50] sm:$0xff]
        %v434 = vld [vmem:[%s243 + $0x58] sm:$0xff]
        %v435 = vld [vmem:[%s243 + $0x60] sm:$0xff]
        %v436 = vld [vmem:[%s243 + $0x68] sm:$0xff]
        %v437 = vld [vmem:[%s243 + $0x70] sm:$0xff]
        %v438 = vld [vmem:[%s243 + $0x78] sm:$0xff]
        %439 = vxpose.xlu0.b32.start [1/16] %v423, 128
        %440 = vxpose.xlu0.b32.cont [2/16] %v424, 128
        %441 = vxpose.xlu0.b32.cont [3/16] %v425, 128
        %442 = vxpose.xlu0.b32.cont [4/16] %v426, 128
        %443 = vxpose.xlu0.b32.cont [5/16] %v427, 128
        %444 = vxpose.xlu0.b32.cont [6/16] %v428, 128
        %445 = vxpose.xlu0.b32.cont [7/16] %v429, 128
        %446 = vxpose.xlu0.b32.cont [8/16] %v430, 128
        %447 = vxpose.xlu0.b32.cont [9/16] %v431, 128
        %448 = vxpose.xlu0.b32.cont [10/16] %v432, 128
        %449 = vxpose.xlu0.b32.cont [11/16] %v433, 128
        %450 = vxpose.xlu0.b32.cont [12/16] %v434, 128
        %451 = vxpose.xlu0.b32.cont [13/16] %v435, 128
        %452 = vxpose.xlu0.b32.cont [14/16] %v436, 128
        %453 = vxpose.xlu0.b32.cont [15/16] %v437, 128
        %454 = vxpose.xlu0.b32.end [16/16] %v438, 128
        %v455 = vpop.trf.xlu0
        %v456 = vpop.trf.xlu0
        %v457 = vpop.trf.xlu0
        %v458 = vpop.trf.xlu0
        %v459 = vpop.trf.xlu0
        %v460 = vpop.trf.xlu0
        %v461 = vpop.trf.xlu0
        %v462 = vpop.trf.xlu0
        %v463 = vpop.trf.xlu0
        %v464 = vpop.trf.xlu0
        %v465 = vpop.trf.xlu0
        %v466 = vpop.trf.xlu0
        %v467 = vpop.trf.xlu0
        %v468 = vpop.trf.xlu0
        %v469 = vpop.trf.xlu0
        %v470 = vpop.trf.xlu0
        %v471 = vmul.f32 %v455, %v455
        %v472 = vmul.f32 %v456, %v456
        %v473 = vmul.f32 %v457, %v457
        %v474 = vmul.f32 %v458, %v458
        %v475 = vadd.f32 %v471, %v472
        %v476 = vadd.f32 %v475, %v473
        %v477 = vadd.f32 %v476, %v474
        %v478 = vrot.slane %v477, 4
        %v479 = vadd.f32 %v477, %v478
        %v480 = vrot.slane %v479, 2
        %v481 = vadd.f32 %v479, %v480
        %v482 = vrot.slane %v481, 1
        %v483 = vadd.f32 %v481, %v482
        %v484 = vmax.f32 %v483, 1e-24
        %v485 = vrsqrt.pop %v484
        %v486 = vmul.f32 %v485, %v484
        %v487 = vmul.f32 %v486, %v485
        %v488 = vmul.f32 0.5, %v487
        %v489 = vsub.f32 1.5, %v488
        %v490 = vmul.f32 %v485, %v489
        %vm491 = vweird.f32 %v484
        %vm492 = vweird.f32 %v485
        %vm493 = vmor %vm491, %vm492
        %v494 = vsel %vm493, %v485, %v490
        %v495 = vmul.f32 %v455, %v494
        %v496 = vmul.f32 %v456, %v494
        %v497 = vmul.f32 %v457, %v494
        %v498 = vmul.f32 %v458, %v494
        %v499 = vadd.f32 %v495, %v419
        %v500 = vadd.f32 %v496, %v420
        %v501 = vadd.f32 %v497, %v421
        %v502 = vadd.f32 %v498, %v422
        %v503 = vmul.f32 %v499, %v499
        %v504 = vmul.f32 %v500, %v500
        %v505 = vmul.f32 %v501, %v501
        %v506 = vmul.f32 %v502, %v502
        %v507 = vadd.f32 %v503, %v504
        %v508 = vadd.f32 %v507, %v505
        %v509 = vadd.f32 %v508, %v506
        %v510 = vrot.slane %v509, 4
        %v511 = vadd.f32 %v509, %v510
        %v512 = vrot.slane %v511, 2
        %v513 = vadd.f32 %v511, %v512
        %v514 = vrot.slane %v513, 1
        %v515 = vadd.f32 %v513, %v514
        %v516 = vrsqrt.pop %v515
        %v517 = vmul.f32 %v516, %v515
        %v518 = vmul.f32 %v517, %v516
        %v519 = vmul.f32 0.5, %v518
        %v520 = vsub.f32 1.5, %v519
        %v521 = vmul.f32 %v516, %v520
        %v522 = vmul.f32 %v515, %v521
        %vm523 = vcmp.eq.f32.partialorder %v515, inf
        %v524 = vsel %vm523, %v515, %v522
        %vm525 = vcmp.eq.f32.partialorder %v515, 0.0
        %v526 = vand.u32 %v515, 2147483648
        %v527 = vsel %vm525, %v526, %v524
        %v528 = vld [vmem:[%s261] sm:$0xff]
        %v529 = vld [vmem:[%s261 + $0x8] sm:$0xff]
        %v530 = vld [vmem:[%s261 + $0x10] sm:$0xff]
        %v531 = vld [vmem:[%s261 + $0x18] sm:$0xff]
        %v532 = vld [vmem:[%s261 + $0x20] sm:$0xff]
        %v533 = vld [vmem:[%s261 + $0x28] sm:$0xff]
        %v534 = vld [vmem:[%s261 + $0x30] sm:$0xff]
        %v535 = vld [vmem:[%s261 + $0x38] sm:$0xff]
        %v536 = vld [vmem:[%s261 + $0x40] sm:$0xff]
        %v537 = vld [vmem:[%s261 + $0x48] sm:$0xff]
        %v538 = vld [vmem:[%s261 + $0x50] sm:$0xff]
        %v539 = vld [vmem:[%s261 + $0x58] sm:$0xff]
        %v540 = vld [vmem:[%s261 + $0x60] sm:$0xff]
        %v541 = vld [vmem:[%s261 + $0x68] sm:$0xff]
        %v542 = vld [vmem:[%s261 + $0x70] sm:$0xff]
        %v543 = vld [vmem:[%s261 + $0x78] sm:$0xff]
        %544 = vxpose.xlu0.b32.start [1/16] %v528, 128
        %545 = vxpose.xlu0.b32.cont [2/16] %v529, 128
        %546 = vxpose.xlu0.b32.cont [3/16] %v530, 128
        %547 = vxpose.xlu0.b32.cont [4/16] %v531, 128
        %548 = vxpose.xlu0.b32.cont [5/16] %v532, 128
        %549 = vxpose.xlu0.b32.cont [6/16] %v533, 128
        %550 = vxpose.xlu0.b32.cont [7/16] %v534, 128
        %551 = vxpose.xlu0.b32.cont [8/16] %v535, 128
        %552 = vxpose.xlu0.b32.cont [9/16] %v536, 128
        %553 = vxpose.xlu0.b32.cont [10/16] %v537, 128
        %554 = vxpose.xlu0.b32.cont [11/16] %v538, 128
        %555 = vxpose.xlu0.b32.cont [12/16] %v539, 128
        %556 = vxpose.xlu0.b32.cont [13/16] %v540, 128
        %557 = vxpose.xlu0.b32.cont [14/16] %v541, 128
        %558 = vxpose.xlu0.b32.cont [15/16] %v542, 128
        %559 = vxpose.xlu0.b32.end [16/16] %v543, 128
        %v560 = vpop.trf.xlu0
        %v561 = vpop.trf.xlu0
        %v562 = vpop.trf.xlu0
        %v563 = vpop.trf.xlu0
        %v564 = vpop.trf.xlu0
        %v565 = vpop.trf.xlu0
        %v566 = vpop.trf.xlu0
        %v567 = vpop.trf.xlu0
        %v568 = vpop.trf.xlu0
        %v569 = vpop.trf.xlu0
        %v570 = vpop.trf.xlu0
        %v571 = vpop.trf.xlu0
        %v572 = vpop.trf.xlu0
        %v573 = vpop.trf.xlu0
        %v574 = vpop.trf.xlu0
        %v575 = vpop.trf.xlu0
        %v576 = vmul.f32 %v560, %v560
        %v577 = vmul.f32 %v561, %v561
        %v578 = vmul.f32 %v562, %v562
        %v579 = vmul.f32 %v563, %v563
        %v580 = vadd.f32 %v576, %v577
        %v581 = vadd.f32 %v580, %v578
        %v582 = vadd.f32 %v581, %v579
        %v583 = vrot.slane %v582, 4
        %v584 = vadd.f32 %v582, %v583
        %v585 = vrot.slane %v584, 2
        %v586 = vadd.f32 %v584, %v585
        %v587 = vrot.slane %v586, 1
        %v588 = vadd.f32 %v586, %v587
        %v589 = vmax.f32 %v588, 1e-24
        %v590 = vrsqrt.pop %v589
        %v591 = vmul.f32 %v590, %v589
        %v592 = vmul.f32 %v591, %v590
        %v593 = vmul.f32 0.5, %v592
        %v594 = vsub.f32 1.5, %v593
        %v595 = vmul.f32 %v590, %v594
        %vm596 = vweird.f32 %v589
        %vm597 = vweird.f32 %v590
        %vm598 = vmor %vm596, %vm597
        %v599 = vsel %vm598, %v590, %v595
        %v600 = vmul.f32 %v560, %v599
        %v601 = vmul.f32 %v561, %v599
        %v602 = vmul.f32 %v562, %v599
        %v603 = vmul.f32 %v563, %v599
        %v604 = vadd.f32 %v600, %v419
        %v605 = vadd.f32 %v601, %v420
        %v606 = vadd.f32 %v602, %v421
        %v607 = vadd.f32 %v603, %v422
        %v608 = vmul.f32 %v604, %v604
        %v609 = vmul.f32 %v605, %v605
        %v610 = vmul.f32 %v606, %v606
        %v611 = vmul.f32 %v607, %v607
        %v612 = vadd.f32 %v608, %v609
        %v613 = vadd.f32 %v612, %v610
        %v614 = vadd.f32 %v613, %v611
        %v615 = vrot.slane %v614, 4
        %v616 = vadd.f32 %v614, %v615
        %v617 = vrot.slane %v616, 2
        %v618 = vadd.f32 %v616, %v617
        %v619 = vrot.slane %v618, 1
        %v620 = vadd.f32 %v618, %v619
        %v621 = vrsqrt.pop %v620
        %v622 = vmul.f32 %v621, %v620
        %v623 = vmul.f32 %v622, %v621
        %v624 = vmul.f32 0.5, %v623
        %v625 = vsub.f32 1.5, %v624
        %v626 = vmul.f32 %v621, %v625
        %v627 = vmul.f32 %v620, %v626
        %vm628 = vcmp.eq.f32.partialorder %v620, inf
        %v629 = vsel %vm628, %v620, %v627
        %vm630 = vcmp.eq.f32.partialorder %v620, 0.0
        %v631 = vand.u32 %v620, 2147483648
        %v632 = vsel %vm630, %v631, %v629
        %v633 = vadd.f32 %v527, 1.0
        %v634 = vsub.f32 %v633, %v632
        %v635 = vmax.f32 %v634, 0.0
        %v636 = vlaneseq
        %v637 = vand.u32 %v636, 127
        %s638 = smul.u32 %s18, 128
        %v639 = vstv %s638
        %v640 = vadd.s32 %v639, %v637
        %vm641 = vcmp.lt.s32.totalorder %v640, 200
        %v642 = vsel %vm641, %v635, 0.0
        %643 = vst [vmem:[%s238] sm:$0x1] %v642
        %s644 = sand.u32 %s130, 1
        %s645 = scalar_lea.sflag [#allocation3], %s644
        %s646 = sand.u32 %s130, 1
        %s647 = scalar_lea.vmem [#allocation2], %s646
        // Predicated region
        $region37: #{tpu_custom_call.1} parent=35 // pred_check
          %p648 = pneg %p140
        $region38: #{tpu_custom_call.1} parent=35 // pred_check_branch
          %650 = sbr.rel (%p648) target = $region40
        $region39: #{tpu_custom_call.1} parent=35 // pred_region
          %652 = vsyncadd %s645, 0
          %s653 = scalar_lea.hbm %s4, %s18
          %s655 = sshll.u32 %s647, 4
          %s656 = int_to_ptr.vmem [resolvable:$true] %s655
          %s657 = sshll.u32 %s653, 4
          %s658 = int_to_ptr.hbm [resolvable:$true] %s657
          %660 = dma.vmem_to_hbm [thread:$0]  %s656, 16, %s658, %s645
        $region40: #{tpu_custom_call.1} parent=35 // pred_fallthru
          _
      $region36: #{tpu_custom_call.1} parent=5 // pred_fallthru
        _
      %p661 = scmp.le.s32.totalorder 2, %s13
      // Predicated region
      $region41: #{tpu_custom_call.1} parent=5 // pred_check
        %p662 = pneg %p661
      $region42: #{tpu_custom_call.1} parent=5 // pred_check_branch
        %664 = sbr.rel (%p662) target = $region44
      $region43: #{tpu_custom_call.1} parent=5 // pred_region
        %s665 = ssub.s32 %s13, 2
        // Predicated region
        $region45: #{tpu_custom_call.1} parent=43 // pred_check
          %p666 = pneg %p146
        $region46: #{tpu_custom_call.1} parent=43 // pred_check_branch
          %668 = sbr.rel (%p666) target = $region48
        $region47: #{tpu_custom_call.1} parent=43 // pred_region
          %s669 = sand.u32 %s131, 1
          %s670 = scalar_lea.sflag [#allocation3], %s669
          %s671 = sand.u32 %s131, 1
          %s672 = scalar_lea.vmem [#allocation2], %s671
          %674 = dma.done %s670, 16
        $region48: #{tpu_custom_call.1} parent=43 // pred_fallthru
          _
      $region44: #{tpu_custom_call.1} parent=5 // pred_fallthru
        _
    $region6: #{tpu_custom_call.1} parent=1 // loop_footer
      %s17 = sadd.s32 1, %s13
    $region7: #{tpu_custom_call.1} parent=1 // loop_footer_branch
      %12 = sbr.rel target = $region3
    $region8: #{tpu_custom_call.1} parent=1 // loop_exit
      _
    %675 = vsyncpa [#allocation3], 1
    %s676 = scalar_lea.sflag [#allocation3], 1
    %677 = vsyncpa %s676, 1

</llo_original>
